<compile_context>
chip_gen: v7x
topology: tpu7x:2x2x1
jax: 0.10.0
libtpu: 0.0.40
codegen_flags: <defaults>
</compile_context>

<pallas_src>
import jax
import jax.numpy as jnp
from jax import lax
from jax.experimental import pallas as pl
from jax.experimental.pallas import tpu as pltpu


def _round_up(x, m):
    return (x + m - 1) // m * m


# ----------------------------------------------------------------------------
# Batch-mode kernel: fused, double-buffered row gather + L1 score.
#   score[b, n] = gamma - sum_d | T_a[ids_a[b,n], d] (- T_b[ids_b[b,n], d])
#                                 + other[b, d] |
# ----------------------------------------------------------------------------
def _make_batch_kernel(*, n_tile, gamma, use_b, issue_unroll=8):

    def issue_tile(ids_ref, tab_ref, buf, sem, tab_idx, base, slot):
        """Start one row-gather DMA per id of the tile into buf[slot]."""
        def issue_one(j, carry):
            row = ids_ref[base + j]
            pltpu.make_async_copy(
                tab_ref.at[row], buf.at[slot, j], sem.at[tab_idx, slot]).start()
            return carry
        lax.fori_loop(0, n_tile, issue_one, 0,
                      unroll=min(issue_unroll, n_tile))

    def wait_tile(buf, sem, tab_idx, slot):
        # One aggregate wait per (table, slot): the n_tile row copies issued
        # above signal sem[tab_idx, slot] with exactly the byte size of
        # buf[slot], so a single wait sized as the whole slot consumes them
        # all (no per-copy scalar-slot waits).
        pltpu.make_async_copy(buf.at[slot], buf.at[slot],
                              sem.at[tab_idx, slot]).wait()

    def body(ids_a_ref, ids_b_ref, tab_a_ref, tab_b_ref, other_ref, out_ref,
             buf_a, buf_b, sem):
        b = pl.program_id(0)
        nt = pl.program_id(1)
        n_tiles = pl.num_programs(1)
        total = pl.num_programs(0) * n_tiles
        linear = b * n_tiles + nt            # sequential step index
        slot = lax.rem(linear, 2)
        base = linear * n_tile               # offset into the flattened ids

        def gather_into(base_, slot_):
            issue_tile(ids_a_ref, tab_a_ref, buf_a, sem, 0, base_, slot_)
            if use_b:
                issue_tile(ids_b_ref, tab_b_ref, buf_b, sem, 1, base_, slot_)

        # Prime the double buffer at the very first grid step.
        @pl.when(linear == 0)
        def _():
            gather_into(base, slot)

        # Prefetch the next tile's rows into the other slot; those DMAs run in
        # the background while this step waits/computes.
        @pl.when(linear + 1 < total)
        def _():
            gather_into(base + n_tile, 1 - slot)

        # Wait (once per table) for this tile's rows, then compute.
        wait_tile(buf_a, sem, 0, slot)
        if use_b:
            wait_tile(buf_b, sem, 1, slot)

        rows = buf_a[slot]                              # (n_tile, D) f32
        if use_b:
            rows = rows - buf_b[slot]
        diff = rows + other_ref[...]                    # other: (1, D) f32
        s = jnp.sum(jnp.abs(diff), axis=-1)             # (n_tile,)
        out_ref[...] = (gamma - s)[None, :]             # (1, n_tile) lane-dense

    if use_b:
        def kernel(ids_a, ids_b, tab_a, tab_b, other, out, buf_a, buf_b, sem):
            body(ids_a, ids_b, tab_a, tab_b, other, out, buf_a, buf_b, sem)
    else:
        def kernel(ids_a, tab_a, other, out, buf_a, sem):
            body(ids_a, None, tab_a, None, other, out, buf_a, None, sem)
    return kernel


def _batch_score(ids_a, table_a, other, gamma, ids_b=None, table_b=None,
                 max_n_tile=256, max_id_bytes=1 << 20):
    """ids_*: (B, N) int ids; table_*: (rows, D) f32; other: (B, D) f32.
    Returns (B, N) f32: gamma - || T_a[ids_a] (- T_b[ids_b]) + other ||_1."""
    use_b = ids_b is not None
    B, N = ids_a.shape
    D = table_a.shape[1]

    # Lane-dense output tiles (multiple of 128 whenever N allows it); larger
    # tiles amortize per-step grid overhead.  VMEM per step stays tiny
    # (2 slots x n_tile x D x 4B per table) even at n_tile=256.
    if N >= max_n_tile:
        n_tile = max_n_tile
    elif N >= 128:
        n_tile = _round_up(N, 128)
    else:
        n_tile = N
    n_pad = _round_up(N, n_tile)
    n_tiles = n_pad // n_tile

    # Chunk the batch so the scalar-prefetched id arrays stay small in SMEM.
    ids_bytes_per_row = 4 * n_pad * (2 if use_b else 1)
    b_chunk = max(1, min(B, max_id_bytes // max(ids_bytes_per_row, 1)))

    kernel = _make_batch_kernel(n_tile=n_tile, gamma=float(gamma), use_b=use_b)

    def prep_ids(ids):
        ids = ids.astype(jnp.int32)
        if n_pad != N:
            ids = jnp.pad(ids, ((0, 0), (0, n_pad - N)))   # pad with row 0
        return ids.reshape(-1)

    def run(ids_a_c, ids_b_c, other_c):
        bc = ids_a_c.shape[0]
        prefetch = [prep_ids(ids_a_c)]
        tables = [table_a]
        in_specs = [pl.BlockSpec(memory_space=pl.ANY)]
        scratch = [pltpu.VMEM((2, n_tile, D), jnp.float32)]
        if use_b:
            prefetch.append(prep_ids(ids_b_c))
            tables.append(table_b)
            in_specs.append(pl.BlockSpec(memory_space=pl.ANY))
            scratch.append(pltpu.VMEM((2, n_tile, D), jnp.float32))
        in_specs.append(pl.BlockSpec((None, 1, D), lambda b, n, *_: (b, 0, 0)))
        scratch.append(pltpu.SemaphoreType.DMA((2, 2)))

        out = pl.pallas_call(
            kernel,
            out_shape=jax.ShapeDtypeStruct((bc, 1, n_pad), jnp.float32),
            grid_spec=pltpu.PrefetchScalarGridSpec(
                num_scalar_prefetch=len(prefetch),
                grid=(bc, n_tiles),
                in_specs=in_specs,
                out_specs=pl.BlockSpec((None, 1, n_tile),
                                       lambda b, n, *_: (b, 0, n)),
                scratch_shapes=scratch),
            # Both axes sequential: the gather double-buffer carries DMA state
            # across consecutive grid steps.
            compiler_params=pltpu.CompilerParams(
                dimension_semantics=("arbitrary", "arbitrary")),
        )(*prefetch, *tables,
          other_c.astype(jnp.float32).reshape(bc, 1, D))
        return out.reshape(bc, n_pad)[:, :N]

    if b_chunk >= B:
        return run(ids_a, ids_b, other)
    outs = []
    for s in range(0, B, b_chunk):
        e = min(B, s + b_chunk)
        outs.append(run(ids_a[s:e],
                        None if ids_b is None else ids_b[s:e],
                        other[s:e]))
    return jnp.concatenate(outs, axis=0)


# ----------------------------------------------------------------------------
# Single-mode kernel (N == 1): pack the batch on the sublane axis.
#   score[b] = gamma - sum_d | sum_k sign_k * op_k[b, d] |
# ----------------------------------------------------------------------------
def _make_single_kernel(signs, gamma):
    n_ops = len(signs)

    def kernel(*args):
        out_ref = args[n_ops]
        acc = args[0][...]
        if signs[0] < 0:
            acc = -acc
        for ref, sg in zip(args[1:n_ops], signs[1:]):
            acc = acc - ref[...] if sg < 0 else acc + ref[...]
        s = jnp.sum(jnp.abs(acc), axis=-1)            # (b_tile,)
        out_ref[...] = (gamma - s)[None, :]           # (1, b_tile)

    return kernel


def _single_score(ops_signs, gamma):
    ops = [o.astype(jnp.float32) for o, _ in ops_signs]
    signs = tuple(sg for _, sg in ops_signs)
    B, D = ops[0].shape
    n_ops = len(ops)

    # Keep double-buffered operand blocks well inside the scoped-VMEM default
    # of every generation (v5e: 16 MiB).
    budget = 8 * 1024 * 1024
    cap = budget // (n_ops * 2 * D * 4)
    b_tile_max = max(128, min(512, (cap // 128) * 128))

    if B > b_tile_max:
        b_tile = b_tile_max
        b_pad = _round_up(B, b_tile)
        ops = [jnp.pad(o, ((0, b_pad - B), (0, 0))) for o in ops]
    else:
        b_tile = B
        b_pad = B

    out = pl.pallas_call(
        _make_single_kernel(signs, float(gamma)),
        out_shape=jax.ShapeDtypeStruct((1, b_pad), jnp.float32),
        grid=(b_pad // b_tile,),
        in_specs=[pl.BlockSpec((b_tile, D), lambda i: (i, 0)) for _ in ops],
        out_specs=pl.BlockSpec((1, b_tile), lambda i: (0, i)),
        compiler_params=pltpu.CompilerParams(
            dimension_semantics=("parallel",)),
    )(*ops)
    return out[0, :B].reshape(B, 1)


# ----------------------------------------------------------------------------
# KGEModel in JAX, scoring done by the Pallas kernels above.
# ----------------------------------------------------------------------------
class KGEModelPallas:
    def __init__(self, train_seeds, nentity, nrelation, nvalue, hidden_dim,
                 gamma, key):
        self.nentity = nentity
        self.nrelation = nrelation
        self.hidden_dim = hidden_dim
        self.epsilon = 2.0
        self.gamma = float(gamma)
        self.embedding_range = (self.gamma + self.epsilon) / hidden_dim

        k_ent, k_rel = jax.random.split(key)
        ent = jax.random.uniform(
            k_ent, (nentity, hidden_dim), jnp.float32,
            -self.embedding_range, self.embedding_range)
        # entity_weight[left_entity] = entity_weight[right_entity]
        for left_entity, right_entity in train_seeds:
            ent = ent.at[left_entity].set(ent[right_entity])
        rel = jax.random.uniform(
            k_rel, (nrelation, hidden_dim), jnp.float32,
            -self.embedding_range, self.embedding_range)

        # f32 tables: per-row gather DMAs stay 32-bit aligned and scores match
        # the f32 PyTorch module exactly.
        self.entity_embedding = ent          # (nentity, D)
        self.relation_embedding = rel        # (nrelation, D)

    def _ent(self, idx):
        return jnp.take(self.entity_embedding, idx, axis=0)

    def _rel(self, idx):
        return jnp.take(self.relation_embedding, idx, axis=0)

    # --- forward -------------------------------------------------------------
    def forward(self, sample, mode='single'):
        g = self.gamma

        if mode == 'single':
            h = self._ent(sample[:, 0])
            r = self._rel(sample[:, 1])
            t = self._ent(sample[:, 2])
            return _single_score([(h, +1), (r, +1), (t, -1)], g)

        elif mode == 'align-single':
            h = self._ent(sample[:, 0])
            t = self._ent(sample[:, 1])
            return _single_score([(h, +1), (t, -1)], g)

        elif mode == 'av-single':
            a = self._rel(sample[:, 0, 0])
            v = self._ent(sample[:, 0, 1])
            a_ = self._rel(sample[:, 1, 0])
            v_ = self._ent(sample[:, 1, 1])
            return _single_score([(a, +1), (v, -1), (a_, -1), (v_, +1)], g)

        elif mode == 'head-batch':
            tail_part, head_part = sample
            other = self._rel(tail_part[:, 1]) - self._ent(tail_part[:, 2])
            return _batch_score(head_part, self.entity_embedding, other, g)

        elif mode == 'tail-batch':
            head_part, tail_part = sample
            other = -(self._ent(head_part[:, 0]) + self._rel(head_part[:, 1]))
            return _batch_score(tail_part, self.entity_embedding, other, g)

        elif mode == 'align-head-batch':
            tail_part, head_part = sample
            other = -self._ent(tail_part[:, 1])
            return _batch_score(head_part, self.entity_embedding, other, g)

        elif mode == 'align-tail-batch':
            head_part, tail_part = sample
            other = -self._ent(head_part[:, 0])
            return _batch_score(tail_part, self.entity_embedding, other, g)

        elif mode == 'av-head-batch':
            tail_part, head_part = sample
            other = -(self._rel(tail_part[:, 1, 0])
                      - self._ent(tail_part[:, 1, 1]))
            return _batch_score(head_part[:, :, 0], self.relation_embedding,
                                other, g,
                                ids_b=head_part[:, :, 1],
                                table_b=self.entity_embedding)

        elif mode == 'av-tail-batch':
            head_part, tail_part = sample
            other = -(self._rel(head_part[:, 1, 0])
                      - self._ent(head_part[:, 1, 1]))
            return _batch_score(tail_part[:, :, 0], self.relation_embedding,
                                other, g,
                                ids_b=tail_part[:, :, 1],
                                table_b=self.entity_embedding)

        else:
            raise ValueError('mode %s not supported' % mode)


# ----------------------------------------------------------------------------
# Self test
# ----------------------------------------------------------------------------
if __name__ == "__main__":
    key = jax.random.PRNGKey(0)
    k_model, k_pos, k_neg, k_av = jax.random.split(key, 4)

    nentity, nrelation, nvalue, hidden_dim, gamma = 32, 8, 16, 32, 12.0
    train_seeds = [(0, 1), (2, 3)]
    B, NEG = 2, 8

    model = KGEModelPallas(train_seeds, nentity, nrelation, nvalue,
                           hidden_dim, gamma, k_model)

    # positive triples (B, 3): [head_id, relation_id, tail_id]
    heads = jax.random.randint(k_pos, (B, 1), 0, nentity)
    rels = jax.random.randint(jax.random.fold_in(k_pos, 1), (B, 1), 0, nrelation)
    tails = jax.random.randint(jax.random.fold_in(k_pos, 2), (B, 1), 0, nentity)
    positive_sample = jnp.concatenate([heads, rels, tails], axis=1)

    # negative entity ids (B, NEG)
    negative_sample = jax.random.randint(k_neg, (B, NEG), 0, nentity)

    # align pairs (B, 2): both columns are entity ids (col 1 < nrelation <= nentity)
    align_sample = positive_sample[:, :2]

    # av samples: [:, :, 0] relation ids, [:, :, 1] entity ids
    av_rel_pos = jax.random.randint(k_av, (B, 2, 1), 0, nrelation)
    av_ent_pos = jax.random.randint(jax.random.fold_in(k_av, 1), (B, 2, 1), 0, nentity)
    av_positive_sample = jnp.concatenate([av_rel_pos, av_ent_pos], axis=2)
    av_rel_neg = jax.random.randint(jax.random.fold_in(k_av, 2), (B, NEG, 1), 0, nrelation)
    av_ent_neg = jax.random.randint(jax.random.fold_in(k_av, 3), (B, NEG, 1), 0, nentity)
    av_negative_sample = jnp.concatenate([av_rel_neg, av_ent_neg], axis=2)

    # pure-JAX reference (same f32 tables)
    ent = model.entity_embedding
    rel = model.relation_embedding
    D = hidden_dim

    def l1(x):
        return jnp.sum(jnp.abs(x), axis=-1)

    checks = []

    got = model.forward(positive_sample, mode='single')
    want = gamma - l1(ent[positive_sample[:, 0]] + rel[positive_sample[:, 1]]
                      - ent[positive_sample[:, 2]])[:, None]
    checks.append(('single', got, want))

    got = model.forward((positive_sample, negative_sample), mode='head-batch')
    h = ent[negative_sample.reshape(-1)].reshape(B, NEG, D)
    want = gamma - l1(h + (rel[positive_sample[:, 1]]
                           - ent[positive_sample[:, 2]])[:, None, :])
    checks.append(('head-batch', got, want))

    got = model.forward((positive_sample, negative_sample), mode='tail-batch')
    t = ent[negative_sample.reshape(-1)].reshape(B, NEG, D)
    want = gamma - l1((ent[positive_sample[:, 0]]
                       + rel[positive_sample[:, 1]])[:, None, :] - t)
    checks.append(('tail-batch', got, want))

    got = model.forward(align_sample, mode='align-single')
    want = gamma - l1(ent[align_sample[:, 0]] - ent[align_sample[:, 1]])[:, None]
    checks.append(('align-single', got, want))

    got = model.forward((align_sample, negative_sample), mode='align-head-batch')
    h = ent[negative_sample.reshape(-1)].reshape(B, NEG, D)
    want = gamma - l1(h - ent[align_sample[:, 1]][:, None, :])
    checks.append(('align-head-batch', got, want))

    got = model.forward((align_sample, negative_sample), mode='align-tail-batch')
    t = ent[negative_sample.reshape(-1)].reshape(B, NEG, D)
    want = gamma - l1(ent[align_sample[:, 0]][:, None, :] - t)
    checks.append(('align-tail-batch', got, want))

    got = model.forward(av_positive_sample, mode='av-single')
    a = rel[av_positive_sample[:, 0, 0]]
    v = ent[av_positive_sample[:, 0, 1]]
    a_ = rel[av_positive_sample[:, 1, 0]]
    v_ = ent[av_positive_sample[:, 1, 1]]
    want = gamma - l1(a - v - (a_ - v_))[:, None]
    checks.append(('av-single', got, want))

    a = rel[av_negative_sample[:, :, 0].reshape(-1)].reshape(B, NEG, D)
    v = ent[av_negative_sample[:, :, 1].reshape(-1)].reshape(B, NEG, D)
    a_ = rel[av_positive_sample[:, 1, 0]][:, None, :]
    v_ = ent[av_positive_sample[:, 1, 1]][:, None, :]
    want_av = gamma - l1(a - v - (a_ - v_))

    got = model.forward((av_positive_sample, av_negative_sample),
                        mode='av-head-batch')
    checks.append(('av-head-batch', got, want_av))

    got = model.forward((av_positive_sample, av_negative_sample),
                        mode='av-tail-batch')
    checks.append(('av-tail-batch', got, want_av))

    ok = True
    for name, got, want in checks:
        got = jax.block_until_ready(got)
        if got.shape != want.shape:
            ok = False
            print("shape mismatch:", name, got.shape, want.shape)
            continue
        if not bool(jnp.allclose(got, want, atol=1e-4, rtol=1e-4)):
            ok = False
            print("value mismatch:", name,
                  float(jnp.max(jnp.abs(got - want))))

    if ok:
        print("KERNEL_OK")
    else:
        print("KERNEL_MISMATCH")
</pallas_src>

<mosaic_0001>
module attributes {stable_mosaic.version = 11 : i64} {
  func.func @kernel(%arg0: i32, %arg1: memref<2x32xf32, #tpu.memory_space<vmem>>, %arg2: memref<2x32xf32, #tpu.memory_space<vmem>>, %arg3: memref<2x32xf32, #tpu.memory_space<vmem>>, %arg4: memref<1x2xf32, #tpu.memory_space<vmem>>) attributes {dimension_semantics = [#tpu.dimension_semantics<parallel>], iteration_bounds = array<i64: 1>, scalar_prefetch = 0 : i64, scratch_operands = 0 : i64, tpu.core_type = #tpu.core_type<tc>, window_params = [{transform_indices = @transform_0, window_bounds = array<i64: 2, 32>}, {transform_indices = @transform_1, window_bounds = array<i64: 2, 32>}, {transform_indices = @transform_2, window_bounds = array<i64: 2, 32>}, {transform_indices = @transform_3, window_bounds = array<i64: 1, 2>}]} {
    %c0 = arith.constant 0 : index
    %c0_0 = arith.constant 0 : index
    %0 = vector.load %arg1[%c0, %c0_0] : memref<2x32xf32, #tpu.memory_space<vmem>>, vector<2x32xf32>
    %c0_1 = arith.constant 0 : index
    %c0_2 = arith.constant 0 : index
    %1 = vector.load %arg2[%c0_1, %c0_2] : memref<2x32xf32, #tpu.memory_space<vmem>>, vector<2x32xf32>
    %2 = arith.addf %0, %1 : vector<2x32xf32>
    %c0_3 = arith.constant 0 : index
    %c0_4 = arith.constant 0 : index
    %3 = vector.load %arg3[%c0_3, %c0_4] : memref<2x32xf32, #tpu.memory_space<vmem>>, vector<2x32xf32>
    %4 = arith.subf %2, %3 : vector<2x32xf32>
    %5 = math.absf %4 : vector<2x32xf32>
    %cst = arith.constant dense<0.000000e+00> : vector<2xf32>
    %6 = vector.multi_reduction <add>, %5, %cst [1] : vector<2x32xf32> to vector<2xf32>
    %cst_5 = arith.constant 1.200000e+01 : f32
    %7 = vector.broadcast %cst_5 : f32 to vector<2xf32>
    %8 = arith.subf %7, %6 : vector<2xf32>
    %9 = vector.shape_cast %8 : vector<2xf32> to vector<1x2xf32>
    %c0_6 = arith.constant 0 : index
    %c0_7 = arith.constant 0 : index
    %10 = vector.load %arg4[%c0_6, %c0_7] : memref<1x2xf32, #tpu.memory_space<vmem>>, vector<1x2xf32>
    tpu.vector_store %arg4[%c0_6, %c0_7], %9 {strides = array<i32>} : memref<1x2xf32, #tpu.memory_space<vmem>>, vector<1x2xf32>,
    return
  }
  func.func @transform_0(%arg0: i32) -> (i32, i32) {
    %c0_i32 = arith.constant 0 : i32
    %c0_i32_0 = arith.constant 0 : i32
    return %arg0, %c0_i32 : i32, i32
  }
  func.func @transform_1(%arg0: i32) -> (i32, i32) {
    %c0_i32 = arith.constant 0 : i32
    %c0_i32_0 = arith.constant 0 : i32
    return %arg0, %c0_i32 : i32, i32
  }
  func.func @transform_2(%arg0: i32) -> (i32, i32) {
    %c0_i32 = arith.constant 0 : i32
    %c0_i32_0 = arith.constant 0 : i32
    return %arg0, %c0_i32 : i32, i32
  }
  func.func @transform_3(%arg0: i32) -> (i32, i32) {
    %c0_i32 = arith.constant 0 : i32
    %c0_i32_0 = arith.constant 0 : i32
    return %c0_i32, %arg0 : i32, i32
  }
}

</mosaic_0001>

<llo_original>
// kernel: tpu_custom_call.1
$region0: #{tpu_custom_call.1}
  #allocation0 [shape = 'u32[]', space=smem, size = 0x4, offset = 0x4, fixed_abs, tag = 'smem constant byte address 0x4 - core index']
  #allocation1 [shape = 'u32[144,128]{1,0:T(1,128)}', space=vmem, size = 0x12000, scoped, tag = 'internal scratch']
  %s0 = inlined_call_operand.hbm [shape: f32[2,32], index: 0, kind: input, shape index: {}]
  %s1 = inlined_call_operand.vmem [shape: f32[2,32], index: 1, kind: input, shape index: {}]
  %s2 = inlined_call_operand.vmem [shape: f32[2,32], index: 2, kind: input, shape index: {}]
  %s3 = inlined_call_operand.hbm [shape: f32[1,2], index: 3, kind: output, shape index: {}]
  %s4 = sld [smem:[#allocation0]]
  $region26: #{tpu_custom_call.1} parent=0
    _
  %s6 = ssub.s32 1, %s4
  %s7 = scalar_select 0, %s6, %s4
  $region1: #{tpu_custom_call.1} parent=0
    #allocation2 [shape = 'u8[1024]{0}', space=vmem, size = 0x400, scoped, tag = 'input window, operand 0, single buffered']
    #allocation3 [shape = 's32[1]{0}', space=sflag, size = 0x4, scoped, tag = 'scoped memory for tpu_custom_call.1']
    #allocation4 [shape = 's32[1]{0}', space=sflag, size = 0x4, scoped, tag = 'scoped memory for tpu_custom_call.1']
    #allocation5 [shape = 'u8[512]{0}', space=vmem, size = 0x400, scoped, tag = 'output window, operand 0, single buffered']
    %8 = vsyncpa [#allocation3], 0
    %9 = vsyncpa [#allocation4], 0
    // Predicated region
    $region2: #{tpu_custom_call.1} parent=1 // pred_check
      _
    $region3: #{tpu_custom_call.1} parent=1 // pred_check_branch
      %11 = sbr.rel (0) target = $region5
    $region4: #{tpu_custom_call.1} parent=1 // pred_region
      %s13 = ssub.s32 32, 32
      %14 = vsyncadd [#allocation3], %s13
      %s16 = sshll.u32 [#allocation2], 4
      %s17 = int_to_ptr.vmem [resolvable:$true] %s16
      %19 = dma.hbm_to_vmem [thread:$0]  %s0, 32, %s17, [#allocation3]
    $region5: #{tpu_custom_call.1} parent=1 // pred_fallthru
      _
    // Predicated region
    $region6: #{tpu_custom_call.1} parent=1 // pred_check
      _
    $region7: #{tpu_custom_call.1} parent=1 // pred_check_branch
      %21 = sbr.rel (0) target = $region9
    $region8: #{tpu_custom_call.1} parent=1 // pred_region
      _
    $region9: #{tpu_custom_call.1} parent=1 // pred_fallthru
      _
    // Predicated region
    $region10: #{tpu_custom_call.1} parent=1 // pred_check
      _
    $region11: #{tpu_custom_call.1} parent=1 // pred_check_branch
      %23 = sbr.rel (0) target = $region13
    $region12: #{tpu_custom_call.1} parent=1 // pred_region
      _
    $region13: #{tpu_custom_call.1} parent=1 // pred_fallthru
      _
    // Predicated region
    $region14: #{tpu_custom_call.1} parent=1 // pred_check
      _
    $region15: #{tpu_custom_call.1} parent=1 // pred_check_branch
      %25 = sbr.rel (0) target = $region17
    $region16: #{tpu_custom_call.1} parent=1 // pred_region
      %26 = dma.done [#allocation3], 32
    $region17: #{tpu_custom_call.1} parent=1 // pred_fallthru
      _
    %v27 = vld [vmem:[#allocation2] sm:$0x3]
    %v28 = vld [vmem:[%s1] sm:$0x3]
    %v29 = vadd.f32 %v27, %v28
    %v30 = vld [vmem:[%s2] sm:$0x3]
    %v31 = vsub.f32 %v29, %v30
    %v32 = vand.u32 2147483647, %v31
    %vm33 = vcmask 254976
    %v34 = vsel %vm33, %v32, 0.0
    %35 = vadd.xlane.f32.xlu0 %v34
    %v36 = vpop.xlane.xlu0 %35
    %v37 = vsub.f32 12.0, %v36
    %v39 = vlaneseq
    %v40 = vand.u32 %v39, 127
    %v41 = vlaneseq
    %v42 = vshrl.u32 %v41, 7
    %v43 = vsub.s32 %v40, %v42
    %v44 = vrot.slane %v37, %v43
    %vm46 = vcmask 8192
    %47 = vst.msk [vmem:[#allocation5] sm:$0x1] %vm46, %v44
    // Predicated region
    $region18: #{tpu_custom_call.1} parent=1 // pred_check
      _
    $region19: #{tpu_custom_call.1} parent=1 // pred_check_branch
      %49 = sbr.rel (0) target = $region21
    $region20: #{tpu_custom_call.1} parent=1 // pred_region
      %s51 = ssub.s32 16, 16
      %52 = vsyncadd [#allocation4], %s51
      %s54 = sshll.u32 [#allocation5], 4
      %s55 = int_to_ptr.vmem [resolvable:$true] %s54
      %57 = dma.vmem_to_hbm [thread:$0]  %s55, 16, %s3, [#allocation4]
    $region21: #{tpu_custom_call.1} parent=1 // pred_fallthru
      _
    // Predicated region
    $region22: #{tpu_custom_call.1} parent=1 // pred_check
      _
    $region23: #{tpu_custom_call.1} parent=1 // pred_check_branch
      %59 = sbr.rel (0) target = $region25
    $region24: #{tpu_custom_call.1} parent=1 // pred_region
      %60 = dma.done [#allocation4], 16
    $region25: #{tpu_custom_call.1} parent=1 // pred_fallthru
      _
    %61 = vsyncpa [#allocation3], 1
    %62 = vsyncpa [#allocation4], 1

</llo_original>
